<compile_context>
chip_gen: v5e
topology: v5e:2x2
jax: 0.10.0
libtpu: 0.0.40
codegen_flags: <defaults>
</compile_context>

<pallas_src>
from functools import partial

import jax
import jax.numpy as jnp
from jax.experimental import pallas as pl
from jax.experimental.pallas import tpu as pltpu


def _round_up(n, m):
    return ((n + m - 1) // m) * m


def _choose_tiling(batch, block_b):
    """Pick (tile_rows, padded_batch, n_blocks).

    Blocks are balanced (all carry ~the same number of real rows) and, for
    non-tiny batches, the block count is rounded up to an even number so the
    "parallel" grid axis splits evenly across v7x's two TensorCores. Batch
    padding is at most 8*n_blocks rows (tiles stay multiples of 8 sublanes).
    """
    n_blocks = pl.cdiv(batch, block_b)
    if batch > 8:
        n_blocks = max(n_blocks, 2)
        if n_blocks % 2:
            n_blocks += 1
    tb = _round_up(pl.cdiv(batch, n_blocks), 8)
    bp = tb * n_blocks
    return tb, bp, n_blocks


def mlp_kernel(x_ref, w1_ref, b1_ref, w2_ref, b2_ref, o_ref, *, mm_dtype):
    # fc1: [TB, ncz] @ [ncz, vec]  (MXU, f32 accumulate)
    h = jnp.dot(x_ref[...], w1_ref[...], preferred_element_type=jnp.float32)
    h = h + b1_ref[...]                      # f32 bias add (VPU)
    h = jnp.maximum(h, 0.01 * h)             # LeakyReLU, slope 0.01, f32 (VPU)
    # fc2: [TB, vec] @ [vec, outz] — matmul inputs in mm_dtype, f32 accumulate
    y = jnp.dot(h.astype(mm_dtype), w2_ref[...],
                preferred_element_type=jnp.float32)
    y = y + b2_ref[...]                      # f32 bias add
    o_ref[...] = jnp.tanh(y).astype(o_ref.dtype)   # tanh on EUP, f32 store


@partial(jax.jit, static_argnames=("block_b", "use_bf16"))
def model_skel_forward(x, w1, b1, w2, b2, *, block_b=1024, use_bf16=False):
    """x: (B, ncz); w1: (ncz, vec); b1: (1, vec); w2: (vec, outz); b2: (1, outz).

    Weights are stored (in_features, out_features), i.e. transposed vs.
    PyTorch's nn.Linear (out, in) layout, so the kernel runs plain
    [B, in] @ [in, out] matmuls on the MXU.
    """
    B, ncz = x.shape
    vec = w1.shape[1]
    outz = w2.shape[1]

    mm_dtype = jnp.bfloat16 if use_bf16 else jnp.float32
    xc = x.astype(mm_dtype)
    w1c = w1.astype(mm_dtype)
    w2c = w2.astype(mm_dtype)
    b1c = b1.astype(jnp.float32)
    b2c = b2.astype(jnp.float32)

    tb, bp, n_blocks = _choose_tiling(B, block_b)
    if bp != B:
        xc = jnp.pad(xc, ((0, bp - B), (0, 0)))   # rows of zeros; fused by XLA

    out_padded = pl.pallas_call(
        partial(mlp_kernel, mm_dtype=mm_dtype),
        out_shape=jax.ShapeDtypeStruct((bp, outz), jnp.float32),
        grid=(n_blocks,),
        in_specs=[
            pl.BlockSpec((tb, ncz), lambda i: (i, 0)),    # x: tiled over batch
            pl.BlockSpec((ncz, vec), lambda i: (0, 0)),   # W1: VMEM-resident
            pl.BlockSpec((1, vec), lambda i: (0, 0)),     # b1: resident
            pl.BlockSpec((vec, outz), lambda i: (0, 0)),  # W2: resident
            pl.BlockSpec((1, outz), lambda i: (0, 0)),    # b2: resident
        ],
        out_specs=pl.BlockSpec((tb, outz), lambda i: (i, 0)),
        compiler_params=pltpu.CompilerParams(
            dimension_semantics=("parallel",),
        ),
    )(xc, w1c, b1c, w2c, b2c)

    return out_padded[:B]


def init_params(key, ncz, vec, outz):
    """Deterministic init mimicking nn.Linear's uniform(-1/sqrt(fan_in), 1/sqrt(fan_in))."""
    k1, k2, k3, k4 = jax.random.split(key, 4)
    lim1 = 1.0 / jnp.sqrt(ncz)
    lim2 = 1.0 / jnp.sqrt(vec)
    # stored as (in, out) — transposed vs. PyTorch's (out, in)
    w1 = jax.random.uniform(k1, (ncz, vec), jnp.float32, -lim1, lim1)
    b1 = jax.random.uniform(k2, (1, vec), jnp.float32, -lim1, lim1)
    w2 = jax.random.uniform(k3, (vec, outz), jnp.float32, -lim2, lim2)
    b2 = jax.random.uniform(k4, (1, outz), jnp.float32, -lim2, lim2)
    return w1, b1, w2, b2


def _reference(x, w1, b1, w2, b2):
    h = x @ w1 + b1
    h = jnp.where(h > 0, h, 0.01 * h)
    return jnp.tanh(h @ w2 + b2)


if __name__ == "__main__":
    ncz, vec, outz = 32, 64, 16
    key = jax.random.PRNGKey(0)
    kx, kp, kx2 = jax.random.split(key, 3)
    w1, b1, w2, b2 = init_params(kp, ncz, vec, outz)

    # Small batch: single grid step, no padding.
    B = 8
    x = jax.random.normal(kx, (B, ncz), jnp.float32)
    out = model_skel_forward(x, w1, b1, w2, b2)
    jax.block_until_ready(out)
    ref = _reference(x, w1, b1, w2, b2)
    assert out.shape == (B, outz)
    assert jnp.allclose(out, ref, atol=1e-5, rtol=1e-5)

    # Larger, non-multiple batch: exercises balanced 2-block grid + row padding.
    B2 = 600
    x2 = jax.random.normal(kx2, (B2, ncz), jnp.float32)
    out2 = model_skel_forward(x2, w1, b1, w2, b2)
    jax.block_until_ready(out2)
    ref2 = _reference(x2, w1, b1, w2, b2)
    assert out2.shape == (B2, outz)
    assert jnp.allclose(out2, ref2, atol=1e-5, rtol=1e-5)

    # bf16 fast path (halved input HBM traffic, native-rate MXU); looser tol.
    out3 = model_skel_forward(x2, w1, b1, w2, b2, use_bf16=True)
    jax.block_until_ready(out3)
    assert out3.shape == (B2, outz)
    assert jnp.allclose(out3, ref2, atol=5e-2, rtol=5e-2)

    print("KERNEL_OK")
</pallas_src>

<mosaic_0001>
module attributes {stable_mosaic.version = 11 : i64} {
  func.func @mlp_kernel(%arg0: i32, %arg1: memref<8x32xf32, #tpu.memory_space<vmem>>, %arg2: memref<32x64xf32, #tpu.memory_space<vmem>>, %arg3: memref<1x64xf32, #tpu.memory_space<vmem>>, %arg4: memref<64x16xf32, #tpu.memory_space<vmem>>, %arg5: memref<1x16xf32, #tpu.memory_space<vmem>>, %arg6: memref<8x16xf32, #tpu.memory_space<vmem>>) attributes {dimension_semantics = [#tpu.dimension_semantics<parallel>], iteration_bounds = array<i64: 1>, scalar_prefetch = 0 : i64, scratch_operands = 0 : i64, tpu.core_type = #tpu.core_type<tc>, window_params = [{transform_indices = @transform_0, window_bounds = array<i64: 8, 32>}, {pipeline_mode = #tpu.pipeline_mode<synchronous>, transform_indices = @transform_1, window_bounds = array<i64: 32, 64>}, {pipeline_mode = #tpu.pipeline_mode<synchronous>, transform_indices = @transform_2, window_bounds = array<i64: 1, 64>}, {pipeline_mode = #tpu.pipeline_mode<synchronous>, transform_indices = @transform_3, window_bounds = array<i64: 64, 16>}, {pipeline_mode = #tpu.pipeline_mode<synchronous>, transform_indices = @transform_4, window_bounds = array<i64: 1, 16>}, {transform_indices = @transform_5, window_bounds = array<i64: 8, 16>}]} {
    %c0 = arith.constant 0 : index
    %c0_0 = arith.constant 0 : index
    %0 = vector.load %arg1[%c0, %c0_0] : memref<8x32xf32, #tpu.memory_space<vmem>>, vector<8x32xf32>
    %c0_1 = arith.constant 0 : index
    %c0_2 = arith.constant 0 : index
    %1 = vector.load %arg2[%c0_1, %c0_2] : memref<32x64xf32, #tpu.memory_space<vmem>>, vector<32x64xf32>
    %cst = arith.constant dense<0.000000e+00> : vector<8x64xf32>
    %2 = tpu.matmul %0, %1, %cst {dimension_numbers = #tpu.dot_dimension_numbers<[1], [0], [0], [1], [0, 0, 1, 1], [], []>} : vector<8x32xf32>, vector<32x64xf32>, vector<8x64xf32> -> vector<8x64xf32>
    %c0_3 = arith.constant 0 : index
    %c0_4 = arith.constant 0 : index
    %3 = vector.load %arg3[%c0_3, %c0_4] : memref<1x64xf32, #tpu.memory_space<vmem>>, vector<1x64xf32>
    %4 = vector.broadcast %3 : vector<1x64xf32> to vector<8x64xf32>
    %5 = arith.addf %2, %4 : vector<8x64xf32>
    %cst_5 = arith.constant 0.00999999977 : f32
    %6 = vector.broadcast %cst_5 : f32 to vector<8x64xf32>
    %7 = arith.mulf %6, %5 : vector<8x64xf32>
    %8 = arith.maximumf %5, %7 : vector<8x64xf32>
    %c0_6 = arith.constant 0 : index
    %c0_7 = arith.constant 0 : index
    %9 = vector.load %arg4[%c0_6, %c0_7] : memref<64x16xf32, #tpu.memory_space<vmem>>, vector<64x16xf32>
    %cst_8 = arith.constant dense<0.000000e+00> : vector<8x16xf32>
    %10 = tpu.matmul %8, %9, %cst_8 {dimension_numbers = #tpu.dot_dimension_numbers<[1], [0], [0], [1], [0, 0, 1, 1], [], []>} : vector<8x64xf32>, vector<64x16xf32>, vector<8x16xf32> -> vector<8x16xf32>
    %c0_9 = arith.constant 0 : index
    %c0_10 = arith.constant 0 : index
    %11 = vector.load %arg5[%c0_9, %c0_10] : memref<1x16xf32, #tpu.memory_space<vmem>>, vector<1x16xf32>
    %12 = vector.broadcast %11 : vector<1x16xf32> to vector<8x16xf32>
    %13 = arith.addf %10, %12 : vector<8x16xf32>
    %14 = math.tanh %13 : vector<8x16xf32>
    %c0_11 = arith.constant 0 : index
    %c0_12 = arith.constant 0 : index
    %15 = vector.load %arg6[%c0_11, %c0_12] : memref<8x16xf32, #tpu.memory_space<vmem>>, vector<8x16xf32>
    tpu.vector_store %arg6[%c0_11, %c0_12], %14 {strides = array<i32>} : memref<8x16xf32, #tpu.memory_space<vmem>>, vector<8x16xf32>,
    return
  }
  func.func @transform_0(%arg0: i32) -> (i32, i32) {
    %c0_i32 = arith.constant 0 : i32
    %c0_i32_0 = arith.constant 0 : i32
    return %arg0, %c0_i32 : i32, i32
  }
  func.func @transform_1(%arg0: i32) -> (i32, i32) {
    %c0_i32 = arith.constant 0 : i32
    %c0_i32_0 = arith.constant 0 : i32
    %c0_i32_1 = arith.constant 0 : i32
    return %c0_i32, %c0_i32_0 : i32, i32
  }
  func.func @transform_2(%arg0: i32) -> (i32, i32) {
    %c0_i32 = arith.constant 0 : i32
    %c0_i32_0 = arith.constant 0 : i32
    %c0_i32_1 = arith.constant 0 : i32
    return %c0_i32, %c0_i32_0 : i32, i32
  }
  func.func @transform_3(%arg0: i32) -> (i32, i32) {
    %c0_i32 = arith.constant 0 : i32
    %c0_i32_0 = arith.constant 0 : i32
    %c0_i32_1 = arith.constant 0 : i32
    return %c0_i32, %c0_i32_0 : i32, i32
  }
  func.func @transform_4(%arg0: i32) -> (i32, i32) {
    %c0_i32 = arith.constant 0 : i32
    %c0_i32_0 = arith.constant 0 : i32
    %c0_i32_1 = arith.constant 0 : i32
    return %c0_i32, %c0_i32_0 : i32, i32
  }
  func.func @transform_5(%arg0: i32) -> (i32, i32) {
    %c0_i32 = arith.constant 0 : i32
    %c0_i32_0 = arith.constant 0 : i32
    return %arg0, %c0_i32 : i32, i32
  }
}

</mosaic_0001>

<llo_original>
// kernel: model_skel_forward.1
$region0: #{model_skel_forward.1}
  #allocation0 [shape = 'u32[]', space=smem, size = 0x4, offset = 0x4, fixed_abs, tag = 'smem constant byte address 0x4 - core index']
  #allocation1 [shape = 'u32[72,128]{1,0:T(1,128)}', space=vmem, size = 0x9000, scoped, tag = 'internal scratch']
  %s0 = inlined_call_operand.vmem [shape: f32[8,32], index: 0, kind: input, shape index: {}]
  %s1 = inlined_call_operand.vmem [shape: f32[32,64], index: 1, kind: input, shape index: {}]
  %s2 = inlined_call_operand.vmem [shape: f32[1,64], index: 2, kind: input, shape index: {}]
  %s3 = inlined_call_operand.vmem [shape: f32[64,16], index: 3, kind: input, shape index: {}]
  %s4 = inlined_call_operand.vmem [shape: f32[1,16], index: 4, kind: input, shape index: {}]
  %s5 = inlined_call_operand.hbm [shape: f32[8,16], index: 5, kind: output, shape index: {}]
  %s6 = sld [smem:[#allocation0]]
  $region30: #{model_skel_forward.1} parent=0
    _
  %s8 = ssub.s32 1, %s6
  %s9 = scalar_select 0, %s8, %s6
  $region1: #{model_skel_forward.1} parent=0
    #allocation2 [shape = 'u8[4096]{0}', space=vmem, size = 0x1000, scoped, tag = 'output window, operand 0, single buffered']
    #allocation3 [shape = 's32[1]{0}', space=sflag, size = 0x4, scoped, tag = 'scoped memory for model_skel_forward.1']
    %10 = vsyncpa [#allocation3], 0
    // Predicated region
    $region2: #{model_skel_forward.1} parent=1 // pred_check
      _
    $region3: #{model_skel_forward.1} parent=1 // pred_check_branch
      %12 = sbr.rel (0) target = $region5
    $region4: #{model_skel_forward.1} parent=1 // pred_region
      _
    $region5: #{model_skel_forward.1} parent=1 // pred_fallthru
      _
    // Predicated region
    $region6: #{model_skel_forward.1} parent=1 // pred_check
      _
    $region7: #{model_skel_forward.1} parent=1 // pred_check_branch
      %14 = sbr.rel (0) target = $region9
    $region8: #{model_skel_forward.1} parent=1 // pred_region
      _
    $region9: #{model_skel_forward.1} parent=1 // pred_fallthru
      _
    // Predicated region
    $region10: #{model_skel_forward.1} parent=1 // pred_check
      _
    $region11: #{model_skel_forward.1} parent=1 // pred_check_branch
      %16 = sbr.rel (0) target = $region13
    $region12: #{model_skel_forward.1} parent=1 // pred_region
      _
    $region13: #{model_skel_forward.1} parent=1 // pred_fallthru
      _
    // Predicated region
    $region14: #{model_skel_forward.1} parent=1 // pred_check
      _
    $region15: #{model_skel_forward.1} parent=1 // pred_check_branch
      %18 = sbr.rel (0) target = $region17
    $region16: #{model_skel_forward.1} parent=1 // pred_region
      _
    $region17: #{model_skel_forward.1} parent=1 // pred_fallthru
      _
    // Predicated region
    $region18: #{model_skel_forward.1} parent=1 // pred_check
      _
    $region19: #{model_skel_forward.1} parent=1 // pred_check_branch
      %20 = sbr.rel (0) target = $region21
    $region20: #{model_skel_forward.1} parent=1 // pred_region
      _
    $region21: #{model_skel_forward.1} parent=1 // pred_fallthru
      _
    %v21 = vld [vmem:[%s0] sm:$0xff]
    %v22 = vld [vmem:[%s1] sm:$0xff]
    %v23 = vld [vmem:[%s1 + $0x8] sm:$0xff]
    %v24 = vld [vmem:[%s1 + $0x10] sm:$0xff]
    %v25 = vld [vmem:[%s1 + $0x18] sm:$0xff]
    %v26 = vld [vmem:[%s2] sm:$0x1]
    %v28 = vperm.slane %v26, 0
    %vm30 = vcmask 261120
    %v32 = vsel %vm30, %v21, 0
    %34 = vmatpush.msra.mxu0 0.0
    %35 = vmatpush.msra.mxu0 0.0
    %36 = vmatpush.msra.mxu0 0.0
    %37 = vmatpush.msra.mxu0 0.0
    %38 = vmatpush.msra.mxu0 0.0
    %39 = vmatpush.msra.mxu0 0.0
    %40 = vmatpush.msra.mxu0 0.0
    %41 = vmatpush.msra.mxu0 0.0
    %42 = vmatpush.msra.mxu0 0.0
    %43 = vmatpush.msra.mxu0 0.0
    %44 = vmatpush.msra.mxu0 0.0
    %45 = vmatpush.msra.mxu0 0.0
    %46 = vmatpush.msra.mxu0 %v25
    %47 = vmatpush.msra.mxu0 %v24
    %48 = vmatpush.msra.mxu0 %v23
    %49 = vmatpush.msra.mxu0 %v22
    %50 = vmatmul.f32.gmra.mxu0 %v32
    %v51 = vpop.f32.mrf.mxu0
    %v52 = vadd.f32 %v28, %v51
    %53 = vdwg.mxu0
    %v54 = vmul.f32 %v52, 0.01
    %v55 = vmax.f32 %v52, %v54
    %v56 = vld [vmem:[%s3] sm:$0xff]
    %v57 = vld [vmem:[%s3 + $0x8] sm:$0xff]
    %v58 = vld [vmem:[%s3 + $0x10] sm:$0xff]
    %v59 = vld [vmem:[%s3 + $0x18] sm:$0xff]
    %v60 = vld [vmem:[%s3 + $0x20] sm:$0xff]
    %v61 = vld [vmem:[%s3 + $0x28] sm:$0xff]
    %v62 = vld [vmem:[%s3 + $0x30] sm:$0xff]
    %v63 = vld [vmem:[%s3 + $0x38] sm:$0xff]
    %v64 = vld [vmem:[%s4] sm:$0x1]
    %v66 = vperm.slane %v64, 0
    %vm68 = vcmask 523264
    %v70 = vsel %vm68, %v55, 0
    %72 = vmatpush.msra.mxu0 0.0
    %73 = vmatpush.msra.mxu0 0.0
    %74 = vmatpush.msra.mxu0 0.0
    %75 = vmatpush.msra.mxu0 0.0
    %76 = vmatpush.msra.mxu0 0.0
    %77 = vmatpush.msra.mxu0 0.0
    %78 = vmatpush.msra.mxu0 0.0
    %79 = vmatpush.msra.mxu0 0.0
    %80 = vmatpush.msra.mxu0 %v63
    %81 = vmatpush.msra.mxu0 %v62
    %82 = vmatpush.msra.mxu0 %v61
    %83 = vmatpush.msra.mxu0 %v60
    %84 = vmatpush.msra.mxu0 %v59
    %85 = vmatpush.msra.mxu0 %v58
    %86 = vmatpush.msra.mxu0 %v57
    %87 = vmatpush.msra.mxu0 %v56
    %88 = vmatmul.f32.gmra.mxu0 %v70
    %v89 = vpop.f32.mrf.mxu0
    %v90 = vadd.f32 %v66, %v89
    %91 = vdwg.mxu0
    %v92 = vtanh.pop %v90
    %vm93 = vcmask 130048
    %94 = vst.msk [vmem:[#allocation2] sm:$0xff] %vm93, %v92
    // Predicated region
    $region22: #{model_skel_forward.1} parent=1 // pred_check
      _
    $region23: #{model_skel_forward.1} parent=1 // pred_check_branch
      %96 = sbr.rel (0) target = $region25
    $region24: #{model_skel_forward.1} parent=1 // pred_region
      %98 = vsyncadd [#allocation3], 0
      %s100 = sshll.u32 [#allocation2], 4
      %s101 = int_to_ptr.vmem [resolvable:$true] %s100
      %s102 = sshll.u32 %s5, 4
      %s103 = int_to_ptr.hbm [resolvable:$true] %s102
      %105 = dma.vmem_to_hbm [thread:$0]  %s101, 128, %s103, [#allocation3]
    $region25: #{model_skel_forward.1} parent=1 // pred_fallthru
      _
    // Predicated region
    $region26: #{model_skel_forward.1} parent=1 // pred_check
      _
    $region27: #{model_skel_forward.1} parent=1 // pred_check_branch
      %107 = sbr.rel (0) target = $region29
    $region28: #{model_skel_forward.1} parent=1 // pred_region
      %109 = dma.done [#allocation3], 128
    $region29: #{model_skel_forward.1} parent=1 // pred_fallthru
      _
    %110 = vsyncpa [#allocation3], 1

</llo_original>
